<compile_context>
chip_gen: v7x
topology: tpu7x:2x2x1
jax: 0.10.0
libtpu: 0.0.40
codegen_flags: <defaults>
</compile_context>

<pallas_src>
import jax
import jax.numpy as jnp
from jax import lax
from jax.experimental import pallas as pl
from jax.experimental.pallas import tpu as pltpu


# ---------------------------------------------------------------------------
# Fast path: embedding table resident in VMEM, per-row vector-load gather.
# ---------------------------------------------------------------------------
def _make_vmem_gather_kernel(n_tokens, vocab_size, tile, unroll):
    def kernel(ids_ref, w_ref, o_ref):
        # ids_ref : SMEM (n_tokens,) int32  -- scalar-prefetched token ids
        # w_ref   : VMEM (V, D)             -- whole table (constant index_map)
        # o_ref   : VMEM (tile, D)          -- output block for this grid step
        base = pl.program_id(0) * tile

        def body(j, carry):
            idx = base + j
            in_range = idx < n_tokens
            safe_idx = jnp.where(in_range, idx, 0)
            tok = ids_ref[safe_idx]
            valid = jnp.logical_and(
                in_range, jnp.logical_and(tok >= 0, tok < vocab_size))
            safe_tok = jnp.where(valid, tok, 0)
            row = w_ref[pl.ds(safe_tok, 1), :]          # (1, D) vector load
            # Unconditional store: valid rows get the table row; invalid ids
            # and ragged-tail rows get zeros (no per-row branch, every row of
            # the block is written -> no stale VMEM on writeback).
            o_ref[pl.ds(j, 1), :] = jnp.where(valid, row, jnp.zeros_like(row))
            return carry

        lax.fori_loop(0, tile, body, 0, unroll=unroll)

    return kernel


# ---------------------------------------------------------------------------
# Large-vocab path: table stays in HBM, per-row DMA gather with counted wait.
# ---------------------------------------------------------------------------
def _make_hbm_gather_kernel(n_tokens, vocab_size, tile, unroll):
    def kernel(ids_ref, w_hbm, o_ref, sem):
        # ids_ref : SMEM (n_tokens,) int32
        # w_hbm   : HBM  (V, D)  -- never copied wholesale
        # o_ref   : VMEM (tile, D)
        # sem     : scalar DMA semaphore shared by all row copies
        base = pl.program_id(0) * tile

        # Hoisted zero fill: one block-wide store covers out-of-range ids and
        # the ragged-tail rows (replaces the per-row zero branch).
        o_ref[...] = jnp.zeros_like(o_ref)

        def row_copy(src_row, dst_row):
            return pltpu.make_async_copy(
                w_hbm.at[pl.ds(src_row, 1), :],
                o_ref.at[pl.ds(dst_row, 1), :],
                sem)

        # Phase 1: issue one DMA per valid token, counting issued copies.
        def issue(j, n_started):
            idx = base + j
            in_range = idx < n_tokens
            safe_idx = jnp.where(in_range, idx, 0)
            tok = ids_ref[safe_idx]
            valid = jnp.logical_and(
                in_range, jnp.logical_and(tok >= 0, tok < vocab_size))

            @pl.when(valid)
            def _():
                row_copy(tok, j).start()

            return n_started + valid.astype(jnp.int32)

        n_started = lax.fori_loop(0, tile, issue, jnp.int32(0), unroll=unroll)

        # Phase 2: counted wait.  Every issued copy is an identical (1, D) row,
        # so waiting n_started times on a fixed-shape descriptor consumes all
        # completions without re-reading ids or recomputing validity.
        def drain(_, carry):
            row_copy(0, 0).wait()
            return carry

        lax.fori_loop(0, n_started, drain, 0)

    return kernel


def _choose_tile(n_tokens, d_model, dtype_bytes, target_rows):
    """Output row tile: multiple of 8, VMEM-budgeted, >= 2 grid steps if possible."""
    # Double-buffered output block budget: comfortable on v5e/v6e (128 MiB) and
    # v7x (64 MiB physical, 32 MiB scoped default).
    vmem_budget = 8 * 1024 * 1024
    max_rows = max(8, (vmem_budget // (2 * d_model * dtype_bytes)) // 8 * 8)
    tile = max(8, (min(target_rows, max_rows) // 8) * 8)
    if n_tokens >= 16:
        # Guarantee >= 2 grid steps so both v7x TensorCores get work.
        half = ((pl.cdiv(n_tokens, 2) + 7) // 8) * 8
        tile = min(tile, half)
    if tile >= n_tokens:
        tile = n_tokens
    return tile


def embedding_forward(token_ids, weight, *, force_dma_gather=False):
    """token_ids: (B, S) int; weight: (V, D) -> (B, S, D).  OOB ids -> zero rows."""
    B, S = token_ids.shape
    V, D = weight.shape
    N = B * S
    dtype_bytes = jnp.dtype(weight.dtype).itemsize

    # Fast path when the whole table fits in a small VMEM slice (<= 4 MiB keeps
    # it safe even on v7x's smaller VMEM alongside the output blocks).
    use_vmem_table = (not force_dma_gather) and (V * D * dtype_bytes <= 4 * 1024 * 1024)

    # Bigger tiles amortize the ~0.35 us/grid-step overhead; the DMA path keeps
    # the tile smaller so the number of outstanding row copies stays bounded.
    target_rows = 1024 if use_vmem_table else 256
    tile = _choose_tile(N, D, dtype_bytes, target_rows)
    grid = pl.cdiv(N, tile)
    unroll = max(1, min(8, tile))

    ids = token_ids.reshape(N).astype(jnp.int32)
    compiler_params = pltpu.CompilerParams(
        dimension_semantics=("parallel",),
        vmem_limit_bytes=32 * 1024 * 1024,
    )

    if use_vmem_table:
        kernel = _make_vmem_gather_kernel(N, V, tile, unroll)
        grid_spec = pltpu.PrefetchScalarGridSpec(
            num_scalar_prefetch=1,                                 # ids -> SMEM
            grid=(grid,),
            in_specs=[pl.BlockSpec((V, D), lambda i, ids_ref: (0, 0))],  # table in VMEM
            out_specs=pl.BlockSpec((tile, D), lambda i, ids_ref: (i, 0)),
        )
    else:
        kernel = _make_hbm_gather_kernel(N, V, tile, unroll)
        grid_spec = pltpu.PrefetchScalarGridSpec(
            num_scalar_prefetch=1,
            grid=(grid,),
            in_specs=[pl.BlockSpec(memory_space=pl.ANY)],          # table stays in HBM
            out_specs=pl.BlockSpec((tile, D), lambda i, ids_ref: (i, 0)),
            scratch_shapes=[pltpu.SemaphoreType.DMA(())],
        )

    out = pl.pallas_call(
        kernel,
        out_shape=jax.ShapeDtypeStruct((N, D), weight.dtype),
        grid_spec=grid_spec,
        compiler_params=compiler_params,
    )(ids, weight)

    return out.reshape(B, S, D)


if __name__ == "__main__":
    key = jax.random.PRNGKey(0)
    k_w, k_ids = jax.random.split(key)

    vocab_size = 256
    d_model = 128          # multiple of 128 -> lane-dense rows and output
    batch, seq = 2, 8

    # trunc_normal_(mean=0, std=1, a=-3, b=3)
    weight = jax.random.truncated_normal(
        k_w, -3.0, 3.0, (vocab_size, d_model), dtype=jnp.float32)

    token_ids = jax.random.randint(k_ids, (batch, seq), 0, vocab_size,
                                   dtype=jnp.int32)
    # exercise the out-of-range -> zero-row path
    token_ids = token_ids.at[0, 3].set(vocab_size + 5)
    token_ids = token_ids.at[1, 5].set(-1)

    # plain-JAX reference
    valid = (token_ids >= 0) & (token_ids < vocab_size)
    ref = jnp.where(valid[..., None],
                    weight[jnp.clip(token_ids, 0, vocab_size - 1)], 0.0)

    # VMEM-resident-table fast path (what a 256x128 table actually uses)
    out_fast = jax.block_until_ready(embedding_forward(token_ids, weight))
    # Large-vocab HBM DMA-gather path, forced for coverage
    out_dma = jax.block_until_ready(
        embedding_forward(token_ids, weight, force_dma_gather=True))

    assert out_fast.shape == (batch, seq, d_model)
    assert out_fast.dtype == jnp.float32
    assert jnp.array_equal(out_fast, ref), "VMEM fast path mismatch vs reference"
    assert jnp.array_equal(out_dma, ref), "HBM DMA gather path mismatch vs reference"

    print("KERNEL_OK")
</pallas_src>

<mosaic_0001>
module attributes {stable_mosaic.version = 11 : i64} {
  func.func @kernel(%arg0: i32, %arg1: memref<16xi32, #tpu.memory_space<smem>>, %arg2: memref<256x128xf32, #tpu.memory_space<vmem>>, %arg3: memref<8x128xf32, #tpu.memory_space<vmem>>) attributes {dimension_semantics = [#tpu.dimension_semantics<parallel>], iteration_bounds = array<i64: 2>, scalar_prefetch = 1 : i64, scratch_operands = 0 : i64, tpu.core_type = #tpu.core_type<tc>, window_params = [{pipeline_mode = #tpu.pipeline_mode<synchronous>, transform_indices = @transform_0, window_bounds = array<i64: 256, 128>}, {transform_indices = @transform_1, window_bounds = array<i64: 8, 128>}]} {
    %c8_i32 = arith.constant 8 : i32
    %0 = arith.muli %arg0, %c8_i32 : i32
    %c0_i32 = arith.constant 0 : i32
    %1 = arith.addi %0, %c0_i32 : i32
    %c16_i32 = arith.constant 16 : i32
    %2 = arith.cmpi slt, %1, %c16_i32 : i32
    %c0_i32_0 = arith.constant 0 : i32
    %3 = arith.select %2, %1, %c0_i32_0 : i32
    %4 = arith.index_cast %3 : i32 to index
    %5 = memref.load %arg1[%4] : memref<16xi32, #tpu.memory_space<smem>>
    %c0_i32_1 = arith.constant 0 : i32
    %6 = arith.cmpi sge, %5, %c0_i32_1 : i32
    %c256_i32 = arith.constant 256 : i32
    %7 = arith.cmpi slt, %5, %c256_i32 : i32
    %8 = arith.andi %6, %7 : i1
    %9 = arith.andi %2, %8 : i1
    %c0_i32_2 = arith.constant 0 : i32
    %10 = arith.select %9, %5, %c0_i32_2 : i32
    %11 = arith.index_cast %10 : i32 to index
    %c0 = arith.constant 0 : index
    %12 = vector.load %arg2[%11, %c0] : memref<256x128xf32, #tpu.memory_space<vmem>>, vector<1x128xf32>
    %cst = arith.constant 0.000000e+00 : f32
    %13 = vector.broadcast %cst : f32 to vector<1x128xf32>
    %14 = arith.select %9, %12, %13 : vector<1x128xf32>
    %15 = arith.index_cast %c0_i32 : i32 to index
    %c0_3 = arith.constant 0 : index
    %16 = vector.load %arg3[%15, %c0_3] : memref<8x128xf32, #tpu.memory_space<vmem>>, vector<1x128xf32>
    tpu.vector_store %arg3[%15, %c0_3], %14 {strides = array<i32>} : memref<8x128xf32, #tpu.memory_space<vmem>>, vector<1x128xf32>,
    %c1_i32 = arith.constant 1 : i32
    %17 = arith.addi %0, %c1_i32 : i32
    %c16_i32_4 = arith.constant 16 : i32
    %18 = arith.cmpi slt, %17, %c16_i32_4 : i32
    %c0_i32_5 = arith.constant 0 : i32
    %19 = arith.select %18, %17, %c0_i32_5 : i32
    %20 = arith.index_cast %19 : i32 to index
    %21 = memref.load %arg1[%20] : memref<16xi32, #tpu.memory_space<smem>>
    %c0_i32_6 = arith.constant 0 : i32
    %22 = arith.cmpi sge, %21, %c0_i32_6 : i32
    %c256_i32_7 = arith.constant 256 : i32
    %23 = arith.cmpi slt, %21, %c256_i32_7 : i32
    %24 = arith.andi %22, %23 : i1
    %25 = arith.andi %18, %24 : i1
    %c0_i32_8 = arith.constant 0 : i32
    %26 = arith.select %25, %21, %c0_i32_8 : i32
    %27 = arith.index_cast %26 : i32 to index
    %c0_9 = arith.constant 0 : index
    %28 = vector.load %arg2[%27, %c0_9] : memref<256x128xf32, #tpu.memory_space<vmem>>, vector<1x128xf32>
    %cst_10 = arith.constant 0.000000e+00 : f32
    %29 = vector.broadcast %cst_10 : f32 to vector<1x128xf32>
    %30 = arith.select %25, %28, %29 : vector<1x128xf32>
    %31 = arith.index_cast %c1_i32 : i32 to index
    %c0_11 = arith.constant 0 : index
    %32 = vector.load %arg3[%31, %c0_11] : memref<8x128xf32, #tpu.memory_space<vmem>>, vector<1x128xf32>
    tpu.vector_store %arg3[%31, %c0_11], %30 {strides = array<i32>} : memref<8x128xf32, #tpu.memory_space<vmem>>, vector<1x128xf32>,
    %c2_i32 = arith.constant 2 : i32
    %33 = arith.addi %0, %c2_i32 : i32
    %c16_i32_12 = arith.constant 16 : i32
    %34 = arith.cmpi slt, %33, %c16_i32_12 : i32
    %c0_i32_13 = arith.constant 0 : i32
    %35 = arith.select %34, %33, %c0_i32_13 : i32
    %36 = arith.index_cast %35 : i32 to index
    %37 = memref.load %arg1[%36] : memref<16xi32, #tpu.memory_space<smem>>
    %c0_i32_14 = arith.constant 0 : i32
    %38 = arith.cmpi sge, %37, %c0_i32_14 : i32
    %c256_i32_15 = arith.constant 256 : i32
    %39 = arith.cmpi slt, %37, %c256_i32_15 : i32
    %40 = arith.andi %38, %39 : i1
    %41 = arith.andi %34, %40 : i1
    %c0_i32_16 = arith.constant 0 : i32
    %42 = arith.select %41, %37, %c0_i32_16 : i32
    %43 = arith.index_cast %42 : i32 to index
    %c0_17 = arith.constant 0 : index
    %44 = vector.load %arg2[%43, %c0_17] : memref<256x128xf32, #tpu.memory_space<vmem>>, vector<1x128xf32>
    %cst_18 = arith.constant 0.000000e+00 : f32
    %45 = vector.broadcast %cst_18 : f32 to vector<1x128xf32>
    %46 = arith.select %41, %44, %45 : vector<1x128xf32>
    %47 = arith.index_cast %c2_i32 : i32 to index
    %c0_19 = arith.constant 0 : index
    %48 = vector.load %arg3[%47, %c0_19] : memref<8x128xf32, #tpu.memory_space<vmem>>, vector<1x128xf32>
    tpu.vector_store %arg3[%47, %c0_19], %46 {strides = array<i32>} : memref<8x128xf32, #tpu.memory_space<vmem>>, vector<1x128xf32>,
    %c3_i32 = arith.constant 3 : i32
    %49 = arith.addi %0, %c3_i32 : i32
    %c16_i32_20 = arith.constant 16 : i32
    %50 = arith.cmpi slt, %49, %c16_i32_20 : i32
    %c0_i32_21 = arith.constant 0 : i32
    %51 = arith.select %50, %49, %c0_i32_21 : i32
    %52 = arith.index_cast %51 : i32 to index
    %53 = memref.load %arg1[%52] : memref<16xi32, #tpu.memory_space<smem>>
    %c0_i32_22 = arith.constant 0 : i32
    %54 = arith.cmpi sge, %53, %c0_i32_22 : i32
    %c256_i32_23 = arith.constant 256 : i32
    %55 = arith.cmpi slt, %53, %c256_i32_23 : i32
    %56 = arith.andi %54, %55 : i1
    %57 = arith.andi %50, %56 : i1
    %c0_i32_24 = arith.constant 0 : i32
    %58 = arith.select %57, %53, %c0_i32_24 : i32
    %59 = arith.index_cast %58 : i32 to index
    %c0_25 = arith.constant 0 : index
    %60 = vector.load %arg2[%59, %c0_25] : memref<256x128xf32, #tpu.memory_space<vmem>>, vector<1x128xf32>
    %cst_26 = arith.constant 0.000000e+00 : f32
    %61 = vector.broadcast %cst_26 : f32 to vector<1x128xf32>
    %62 = arith.select %57, %60, %61 : vector<1x128xf32>
    %63 = arith.index_cast %c3_i32 : i32 to index
    %c0_27 = arith.constant 0 : index
    %64 = vector.load %arg3[%63, %c0_27] : memref<8x128xf32, #tpu.memory_space<vmem>>, vector<1x128xf32>
    tpu.vector_store %arg3[%63, %c0_27], %62 {strides = array<i32>} : memref<8x128xf32, #tpu.memory_space<vmem>>, vector<1x128xf32>,
    %c4_i32 = arith.constant 4 : i32
    %65 = arith.addi %0, %c4_i32 : i32
    %c16_i32_28 = arith.constant 16 : i32
    %66 = arith.cmpi slt, %65, %c16_i32_28 : i32
    %c0_i32_29 = arith.constant 0 : i32
    %67 = arith.select %66, %65, %c0_i32_29 : i32
    %68 = arith.index_cast %67 : i32 to index
    %69 = memref.load %arg1[%68] : memref<16xi32, #tpu.memory_space<smem>>
    %c0_i32_30 = arith.constant 0 : i32
    %70 = arith.cmpi sge, %69, %c0_i32_30 : i32
    %c256_i32_31 = arith.constant 256 : i32
    %71 = arith.cmpi slt, %69, %c256_i32_31 : i32
    %72 = arith.andi %70, %71 : i1
    %73 = arith.andi %66, %72 : i1
    %c0_i32_32 = arith.constant 0 : i32
    %74 = arith.select %73, %69, %c0_i32_32 : i32
    %75 = arith.index_cast %74 : i32 to index
    %c0_33 = arith.constant 0 : index
    %76 = vector.load %arg2[%75, %c0_33] : memref<256x128xf32, #tpu.memory_space<vmem>>, vector<1x128xf32>
    %cst_34 = arith.constant 0.000000e+00 : f32
    %77 = vector.broadcast %cst_34 : f32 to vector<1x128xf32>
    %78 = arith.select %73, %76, %77 : vector<1x128xf32>
    %79 = arith.index_cast %c4_i32 : i32 to index
    %c0_35 = arith.constant 0 : index
    %80 = vector.load %arg3[%79, %c0_35] : memref<8x128xf32, #tpu.memory_space<vmem>>, vector<1x128xf32>
    tpu.vector_store %arg3[%79, %c0_35], %78 {strides = array<i32>} : memref<8x128xf32, #tpu.memory_space<vmem>>, vector<1x128xf32>,
    %c5_i32 = arith.constant 5 : i32
    %81 = arith.addi %0, %c5_i32 : i32
    %c16_i32_36 = arith.constant 16 : i32
    %82 = arith.cmpi slt, %81, %c16_i32_36 : i32
    %c0_i32_37 = arith.constant 0 : i32
    %83 = arith.select %82, %81, %c0_i32_37 : i32
    %84 = arith.index_cast %83 : i32 to index
    %85 = memref.load %arg1[%84] : memref<16xi32, #tpu.memory_space<smem>>
    %c0_i32_38 = arith.constant 0 : i32
    %86 = arith.cmpi sge, %85, %c0_i32_38 : i32
    %c256_i32_39 = arith.constant 256 : i32
    %87 = arith.cmpi slt, %85, %c256_i32_39 : i32
    %88 = arith.andi %86, %87 : i1
    %89 = arith.andi %82, %88 : i1
    %c0_i32_40 = arith.constant 0 : i32
    %90 = arith.select %89, %85, %c0_i32_40 : i32
    %91 = arith.index_cast %90 : i32 to index
    %c0_41 = arith.constant 0 : index
    %92 = vector.load %arg2[%91, %c0_41] : memref<256x128xf32, #tpu.memory_space<vmem>>, vector<1x128xf32>
    %cst_42 = arith.constant 0.000000e+00 : f32
    %93 = vector.broadcast %cst_42 : f32 to vector<1x128xf32>
    %94 = arith.select %89, %92, %93 : vector<1x128xf32>
    %95 = arith.index_cast %c5_i32 : i32 to index
    %c0_43 = arith.constant 0 : index
    %96 = vector.load %arg3[%95, %c0_43] : memref<8x128xf32, #tpu.memory_space<vmem>>, vector<1x128xf32>
    tpu.vector_store %arg3[%95, %c0_43], %94 {strides = array<i32>} : memref<8x128xf32, #tpu.memory_space<vmem>>, vector<1x128xf32>,
    %c6_i32 = arith.constant 6 : i32
    %97 = arith.addi %0, %c6_i32 : i32
    %c16_i32_44 = arith.constant 16 : i32
    %98 = arith.cmpi slt, %97, %c16_i32_44 : i32
    %c0_i32_45 = arith.constant 0 : i32
    %99 = arith.select %98, %97, %c0_i32_45 : i32
    %100 = arith.index_cast %99 : i32 to index
    %101 = memref.load %arg1[%100] : memref<16xi32, #tpu.memory_space<smem>>
    %c0_i32_46 = arith.constant 0 : i32
    %102 = arith.cmpi sge, %101, %c0_i32_46 : i32
    %c256_i32_47 = arith.constant 256 : i32
    %103 = arith.cmpi slt, %101, %c256_i32_47 : i32
    %104 = arith.andi %102, %103 : i1
    %105 = arith.andi %98, %104 : i1
    %c0_i32_48 = arith.constant 0 : i32
    %106 = arith.select %105, %101, %c0_i32_48 : i32
    %107 = arith.index_cast %106 : i32 to index
    %c0_49 = arith.constant 0 : index
    %108 = vector.load %arg2[%107, %c0_49] : memref<256x128xf32, #tpu.memory_space<vmem>>, vector<1x128xf32>
    %cst_50 = arith.constant 0.000000e+00 : f32
    %109 = vector.broadcast %cst_50 : f32 to vector<1x128xf32>
    %110 = arith.select %105, %108, %109 : vector<1x128xf32>
    %111 = arith.index_cast %c6_i32 : i32 to index
    %c0_51 = arith.constant 0 : index
    %112 = vector.load %arg3[%111, %c0_51] : memref<8x128xf32, #tpu.memory_space<vmem>>, vector<1x128xf32>
    tpu.vector_store %arg3[%111, %c0_51], %110 {strides = array<i32>} : memref<8x128xf32, #tpu.memory_space<vmem>>, vector<1x128xf32>,
    %c7_i32 = arith.constant 7 : i32
    %113 = arith.addi %0, %c7_i32 : i32
    %c16_i32_52 = arith.constant 16 : i32
    %114 = arith.cmpi slt, %113, %c16_i32_52 : i32
    %c0_i32_53 = arith.constant 0 : i32
    %115 = arith.select %114, %113, %c0_i32_53 : i32
    %116 = arith.index_cast %115 : i32 to index
    %117 = memref.load %arg1[%116] : memref<16xi32, #tpu.memory_space<smem>>
    %c0_i32_54 = arith.constant 0 : i32
    %118 = arith.cmpi sge, %117, %c0_i32_54 : i32
    %c256_i32_55 = arith.constant 256 : i32
    %119 = arith.cmpi slt, %117, %c256_i32_55 : i32
    %120 = arith.andi %118, %119 : i1
    %121 = arith.andi %114, %120 : i1
    %c0_i32_56 = arith.constant 0 : i32
    %122 = arith.select %121, %117, %c0_i32_56 : i32
    %123 = arith.index_cast %122 : i32 to index
    %c0_57 = arith.constant 0 : index
    %124 = vector.load %arg2[%123, %c0_57] : memref<256x128xf32, #tpu.memory_space<vmem>>, vector<1x128xf32>
    %cst_58 = arith.constant 0.000000e+00 : f32
    %125 = vector.broadcast %cst_58 : f32 to vector<1x128xf32>
    %126 = arith.select %121, %124, %125 : vector<1x128xf32>
    %127 = arith.index_cast %c7_i32 : i32 to index
    %c0_59 = arith.constant 0 : index
    %128 = vector.load %arg3[%127, %c0_59] : memref<8x128xf32, #tpu.memory_space<vmem>>, vector<1x128xf32>
    tpu.vector_store %arg3[%127, %c0_59], %126 {strides = array<i32>} : memref<8x128xf32, #tpu.memory_space<vmem>>, vector<1x128xf32>,
    %c8_i32_60 = arith.constant 8 : i32
    return
  }
  func.func @transform_0(%arg0: i32, %arg1: memref<16xi32, #tpu.memory_space<smem>>) -> (i32, i32) {
    %c0_i32 = arith.constant 0 : i32
    %c0_i32_0 = arith.constant 0 : i32
    %c0_i32_1 = arith.constant 0 : i32
    return %c0_i32, %c0_i32_0 : i32, i32
  }
  func.func @transform_1(%arg0: i32, %arg1: memref<16xi32, #tpu.memory_space<smem>>) -> (i32, i32) {
    %c0_i32 = arith.constant 0 : i32
    %c0_i32_0 = arith.constant 0 : i32
    return %arg0, %c0_i32 : i32, i32
  }
}

</mosaic_0001>

<llo_original>
// kernel: tpu_custom_call.1
$region0: #{tpu_custom_call.1}
  #allocation0 [shape = 'u32[]', space=smem, size = 0x4, offset = 0x4, fixed_abs, tag = 'smem constant byte address 0x4 - core index']
  #allocation1 [shape = 'u32[144,128]{1,0:T(1,128)}', space=vmem, size = 0x12000, scoped, tag = 'internal scratch']
  #allocation2 [shape = 's32[1]{0}', space=sflag, size = 0x4, scoped, tag = 'scoped memory for tpu_custom_call.1']
  #allocation3 [shape = 'u8[512]{0}', space=smem, size = 0x200, scoped, tag = 'prefetched SMEM operand 0']
  %s0 = inlined_call_operand.hbm [shape: s32[16], index: 0, kind: input, shape index: {}]
  %s1 = inlined_call_operand.hbm [shape: f32[256,128], index: 1, kind: input, shape index: {}]
  %s2 = inlined_call_operand.hbm [shape: f32[16,128], index: 2, kind: output, shape index: {}]
  %s3 = sld [smem:[#allocation0]]
  $region41: #{tpu_custom_call.1} parent=0
    _
  %s5 = ssub.s32 1, %s3
  %s6 = scalar_select 0, %s5, %s3
  %8 = dma.hbm_to_smem %s0, 16, [#allocation3], [#allocation2]
  %9 = dma.done [#allocation2], 16
  %10 = sfence
  $region1: #{tpu_custom_call.1} parent=0
    #allocation4 [shape = 'u8[131072]{0}', space=vmem, size = 0x20000, scoped, tag = 'input window, operand 1, single buffered']
    #allocation5 [shape = 's32[2]{0}', space=sflag, size = 0x8, scoped, tag = 'scoped memory for tpu_custom_call.1']
    #allocation6 [shape = 's32[2]{0}', space=sflag, size = 0x8, scoped, tag = 'scoped memory for tpu_custom_call.1']
    #allocation7 [shape = 'u8[8192]{0}', space=vmem, size = 0x2000, scoped, tag = 'output window, operand 0']
    %11 = vsyncpa [#allocation5], 0
    %12 = vsyncpa [#allocation6], 0
    %s13 = scalar_lea.sflag [#allocation6], 1
    %14 = vsyncpa %s13, 0
    loop: start=0, step=1, limit=4
    $region2: #{tpu_custom_call.1} parent=1 // loop_pre_header
      _
    $region3: #{tpu_custom_call.1} parent=1 // loop_header
      %s16 = sphi 0, %s20
      %p17 = scmp.ge.s32.totalorder %s16, 4
      %s24 = sphi 0, %s24
      %s26 = sphi 0, %s24
      %s27 = sphi 0, %s26
      %s41 = sphi 0, %s27
      %s47 = sphi 0, %s49
      %s50 = sphi 0, %s47
      %s51 = sphi 0, %s50
      %s67 = sphi 0, %s51
    $region4: #{tpu_custom_call.1} parent=1 // loop_header_branch
      %19 = sbr.rel (%p17) target = $region8
    $region5: #{tpu_custom_call.1} parent=1 // loop_body
      %s21 = ssub.s32 %s16, 1
      %s22 = ssub.s32 %s16, 2
      %s23 = sadd.s32 %s16, 1
      %s25 = sadd.s32 %s24, 1
      %p28 = scmp.eq.s32.totalorder %s16, 1
      %p29 = scmp.ne.s32.totalorder %s24, %s26
      %p30 = scmp.eq.s32.totalorder %s16, 0
      %p31 = por %p29, %p30
      %p32 = scmp.ne.s32.totalorder %s24, %s26
      %p33 = scmp.eq.s32.totalorder %s21, 1
      %p34 = por %p32, %p33
      %p35 = scmp.ne.s32.totalorder %s26, %s27
      %p36 = scmp.eq.s32.totalorder %s21, 0
      %p37 = por %p35, %p36
      %p38 = scmp.ne.s32.totalorder %s26, %s27
      %p39 = scmp.eq.s32.totalorder %s22, 1
      %p40 = por %p38, %p39
      %p42 = scmp.ne.s32.totalorder %s27, %s41
      %p43 = scmp.eq.s32.totalorder %s22, 0
      %p44 = por %p42, %p43
      %s45 = ssub.s32 %s16, %s23
      %p46 = scmp.eq.s32.totalorder %s45, 0
      %s48 = sadd.s32 %s47, 1
      %s49 = scalar_select %p46, %s47, %s48
      %p52 = pneg %p46
      %p53 = scmp.eq.s32.totalorder %s16, 1
      %p54 = por %p52, %p53
      %p55 = scmp.ne.s32.totalorder %s47, %s50
      %p56 = scmp.eq.s32.totalorder %s16, 0
      %p57 = por %p55, %p56
      %p58 = scmp.ne.s32.totalorder %s47, %s50
      %p59 = scmp.eq.s32.totalorder %s21, 1
      %p60 = por %p58, %p59
      %p61 = scmp.ne.s32.totalorder %s50, %s51
      %p62 = scmp.eq.s32.totalorder %s21, 0
      %p63 = por %p61, %p62
      %p64 = scmp.ne.s32.totalorder %s50, %s51
      %p65 = scmp.eq.s32.totalorder %s22, 1
      %p66 = por %p64, %p65
      %p68 = scmp.ne.s32.totalorder %s51, %s67
      %p69 = scmp.eq.s32.totalorder %s22, 0
      %p70 = por %p68, %p69
      %p71 = scmp.le.s32.totalorder 1, %s16
      %p72 = scmp.lt.s32.totalorder %s16, 3
      %p73 = pnand %p71, %p72
      %p74 = pneg %p73
      // Predicated region
      $region9: #{tpu_custom_call.1} parent=5 // pred_check
        _
      $region10: #{tpu_custom_call.1} parent=5 // pred_check_branch
        %76 = sbr.rel (%p73) target = $region12
      $region11: #{tpu_custom_call.1} parent=5 // pred_region
        %s77 = ssub.s32 %s16, 1
        // Predicated region
        $region13: #{tpu_custom_call.1} parent=11 // pred_check
          %p78 = pneg %p37
        $region14: #{tpu_custom_call.1} parent=11 // pred_check_branch
          %80 = sbr.rel (%p78) target = $region16
        $region15: #{tpu_custom_call.1} parent=11 // pred_region
          %s82 = ssub.s32 4096, 4096
          %83 = vsyncadd [#allocation5], %s82
          %s84 = sshll.u32 [#allocation4], 4
          %s85 = int_to_ptr.vmem [resolvable:$true] %s84
          %90 = dma.hbm_to_vmem [thread:$0]  %s1, 4096, %s85, [#allocation5], 128, 128, 8
        $region16: #{tpu_custom_call.1} parent=11 // pred_fallthru
          _
      $region12: #{tpu_custom_call.1} parent=5 // pred_fallthru
        _
      %p91 = scmp.lt.s32.totalorder %s16, 2
      // Predicated region
      $region17: #{tpu_custom_call.1} parent=5 // pred_check
        %p92 = pneg %p91
      $region18: #{tpu_custom_call.1} parent=5 // pred_check_branch
        %94 = sbr.rel (%p92) target = $region20
      $region19: #{tpu_custom_call.1} parent=5 // pred_region
        _
      $region20: #{tpu_custom_call.1} parent=5 // pred_fallthru
        _
      %p95 = scmp.le.s32.totalorder 1, %s16
      %p96 = scmp.lt.s32.totalorder %s16, 3
      %p97 = pnand %p95, %p96
      %p98 = pneg %p97
      // Predicated region
      $region21: #{tpu_custom_call.1} parent=5 // pred_check
        _
      $region22: #{tpu_custom_call.1} parent=5 // pred_check_branch
        %100 = sbr.rel (%p97) target = $region24
      $region23: #{tpu_custom_call.1} parent=5 // pred_region
        %s101 = ssub.s32 %s16, 1
        // Predicated region
        $region25: #{tpu_custom_call.1} parent=23 // pred_check
          %p102 = pneg %p37
        $region26: #{tpu_custom_call.1} parent=23 // pred_check_branch
          %104 = sbr.rel (%p102) target = $region28
        $region27: #{tpu_custom_call.1} parent=23 // pred_region
          %105 = dma.done [#allocation5], 4096
        $region28: #{tpu_custom_call.1} parent=23 // pred_fallthru
          _
        %p106 = pneg %p37
        %p107 = pneg %p34
        %p108 = pneg %p63
        %p109 = pneg %p60
        %s110 = sand.u32 %s50, 1
        %s111 = scalar_lea.sflag [#allocation6], %s110
        %s112 = sand.u32 %s50, 1
        %s113 = smul.addr %s112, 8
        %s114 = scalar_lea.vmem [#allocation7], %s113
        %s115 = smul.u32 %s21, 8
        %p116 = scmp.lt.s32.totalorder %s115, 16
        %s117 = scalar_select %p116, %s115, 0
        %s118 = sld [smem:[#allocation3 + %s117]]
        %p119 = scmp.ge.s32.totalorder %s118, 0
        %p120 = scmp.lt.s32.totalorder %s118, 256
        %p121 = pnand %p119, %p120
        %p122 = pneg %p121
        %p123 = pnand %p116, %p122
        %p124 = pneg %p123
        %s125 = scalar_select %p124, %s118, 0
        %s126 = scalar_lea.vmem [#allocation4], %s125
        %v127 = vld [vmem:[%s126] sm:$0x1]
        %s128 = scalar_select %p124, 1, 0
        %v129 = vstv %s128
        %vm130 = vcmp.eq.s32.totalorder %v129, 1
        %v131 = vsel %vm130, %v127, 0.0
        %132 = vst [vmem:[%s114] sm:$0x1] %v131
        %s133 = sadd.s32 %s115, 1
        %p134 = scmp.lt.s32.totalorder %s133, 16
        %s135 = scalar_select %p134, %s133, 0
        %s136 = sld [smem:[#allocation3 + %s135]]
        %p137 = scmp.ge.s32.totalorder %s136, 0
        %p138 = scmp.lt.s32.totalorder %s136, 256
        %p139 = pnand %p137, %p138
        %p140 = pneg %p139
        %p141 = pnand %p134, %p140
        %p142 = pneg %p141
        %s143 = scalar_select %p142, %s136, 0
        %s144 = scalar_lea.vmem [#allocation4], %s143
        %v145 = vld [vmem:[%s144] sm:$0x1]
        %s146 = scalar_select %p142, 1, 0
        %v147 = vstv %s146
        %vm148 = vcmp.eq.s32.totalorder %v147, 1
        %v149 = vsel %vm148, %v145, 0.0
        %150 = vst [vmem:[%s114 + $0x1] sm:$0x1] %v149
        %s151 = sadd.s32 %s115, 2
        %p152 = scmp.lt.s32.totalorder %s151, 16
        %s153 = scalar_select %p152, %s151, 0
        %s154 = sld [smem:[#allocation3 + %s153]]
        %p155 = scmp.ge.s32.totalorder %s154, 0
        %p156 = scmp.lt.s32.totalorder %s154, 256
        %p157 = pnand %p155, %p156
        %p158 = pneg %p157
        %p159 = pnand %p152, %p158
        %p160 = pneg %p159
        %s161 = scalar_select %p160, %s154, 0
        %s162 = scalar_lea.vmem [#allocation4], %s161
        %v163 = vld [vmem:[%s162] sm:$0x1]
        %s164 = scalar_select %p160, 1, 0
        %v165 = vstv %s164
        %vm166 = vcmp.eq.s32.totalorder %v165, 1
        %v167 = vsel %vm166, %v163, 0.0
        %168 = vst [vmem:[%s114 + $0x2] sm:$0x1] %v167
        %s169 = sadd.s32 %s115, 3
        %p170 = scmp.lt.s32.totalorder %s169, 16
        %s171 = scalar_select %p170, %s169, 0
        %s172 = sld [smem:[#allocation3 + %s171]]
        %p173 = scmp.ge.s32.totalorder %s172, 0
        %p174 = scmp.lt.s32.totalorder %s172, 256
        %p175 = pnand %p173, %p174
        %p176 = pneg %p175
        %p177 = pnand %p170, %p176
        %p178 = pneg %p177
        %s179 = scalar_select %p178, %s172, 0
        %s180 = scalar_lea.vmem [#allocation4], %s179
        %v181 = vld [vmem:[%s180] sm:$0x1]
        %s182 = scalar_select %p178, 1, 0
        %v183 = vstv %s182
        %vm184 = vcmp.eq.s32.totalorder %v183, 1
        %v185 = vsel %vm184, %v181, 0.0
        %186 = vst [vmem:[%s114 + $0x3] sm:$0x1] %v185
        %s187 = sadd.s32 %s115, 4
        %p188 = scmp.lt.s32.totalorder %s187, 16
        %s189 = scalar_select %p188, %s187, 0
        %s190 = sld [smem:[#allocation3 + %s189]]
        %p191 = scmp.ge.s32.totalorder %s190, 0
        %p192 = scmp.lt.s32.totalorder %s190, 256
        %p193 = pnand %p191, %p192
        %p194 = pneg %p193
        %p195 = pnand %p188, %p194
        %p196 = pneg %p195
        %s197 = scalar_select %p196, %s190, 0
        %s198 = scalar_lea.vmem [#allocation4], %s197
        %v199 = vld [vmem:[%s198] sm:$0x1]
        %s200 = scalar_select %p196, 1, 0
        %v201 = vstv %s200
        %vm202 = vcmp.eq.s32.totalorder %v201, 1
        %v203 = vsel %vm202, %v199, 0.0
        %204 = vst [vmem:[%s114 + $0x4] sm:$0x1] %v203
        %s205 = sadd.s32 %s115, 5
        %p206 = scmp.lt.s32.totalorder %s205, 16
        %s207 = scalar_select %p206, %s205, 0
        %s208 = sld [smem:[#allocation3 + %s207]]
        %p209 = scmp.ge.s32.totalorder %s208, 0
        %p210 = scmp.lt.s32.totalorder %s208, 256
        %p211 = pnand %p209, %p210
        %p212 = pneg %p211
        %p213 = pnand %p206, %p212
        %p214 = pneg %p213
        %s215 = scalar_select %p214, %s208, 0
        %s216 = scalar_lea.vmem [#allocation4], %s215
        %v217 = vld [vmem:[%s216] sm:$0x1]
        %s218 = scalar_select %p214, 1, 0
        %v219 = vstv %s218
        %vm220 = vcmp.eq.s32.totalorder %v219, 1
        %v221 = vsel %vm220, %v217, 0.0
        %222 = vst [vmem:[%s114 + $0x5] sm:$0x1] %v221
        %s223 = sadd.s32 %s115, 6
        %p224 = scmp.lt.s32.totalorder %s223, 16
        %s225 = scalar_select %p224, %s223, 0
        %s226 = sld [smem:[#allocation3 + %s225]]
        %p227 = scmp.ge.s32.totalorder %s226, 0
        %p228 = scmp.lt.s32.totalorder %s226, 256
        %p229 = pnand %p227, %p228
        %p230 = pneg %p229
        %p231 = pnand %p224, %p230
        %p232 = pneg %p231
        %s233 = scalar_select %p232, %s226, 0
        %s234 = scalar_lea.vmem [#allocation4], %s233
        %v235 = vld [vmem:[%s234] sm:$0x1]
        %s236 = scalar_select %p232, 1, 0
        %v237 = vstv %s236
        %vm238 = vcmp.eq.s32.totalorder %v237, 1
        %v239 = vsel %vm238, %v235, 0.0
        %240 = vst [vmem:[%s114 + $0x6] sm:$0x1] %v239
        %s241 = sadd.s32 %s115, 7
        %p242 = scmp.lt.s32.totalorder %s241, 16
        %s243 = scalar_select %p242, %s241, 0
        %s244 = sld [smem:[#allocation3 + %s243]]
        %p245 = scmp.ge.s32.totalorder %s244, 0
        %p246 = scmp.lt.s32.totalorder %s244, 256
        %p247 = pnand %p245, %p246
        %p248 = pneg %p247
        %p249 = pnand %p242, %p248
        %p250 = pneg %p249
        %s251 = scalar_select %p250, %s244, 0
        %s252 = scalar_lea.vmem [#allocation4], %s251
        %v253 = vld [vmem:[%s252] sm:$0x1]
        %s254 = scalar_select %p250, 1, 0
        %v255 = vstv %s254
        %vm256 = vcmp.eq.s32.totalorder %v255, 1
        %v257 = vsel %vm256, %v253, 0.0
        %258 = vst [vmem:[%s114 + $0x7] sm:$0x1] %v257
        %s259 = sand.u32 %s50, 1
        %s260 = scalar_lea.sflag [#allocation6], %s259
        %s261 = sand.u32 %s50, 1
        %s262 = smul.addr %s261, 8
        %s263 = scalar_lea.vmem [#allocation7], %s262
        // Predicated region
        $region29: #{tpu_custom_call.1} parent=23 // pred_check
          %p264 = pneg %p60
        $region30: #{tpu_custom_call.1} parent=23 // pred_check_branch
          %266 = sbr.rel (%p264) target = $region32
        $region31: #{tpu_custom_call.1} parent=23 // pred_region
          %s268 = ssub.s32 128, 128
          %269 = vsyncadd %s260, %s268
          %s270 = smul.addr %s21, 128
          %s271 = scalar_lea.hbm %s2, %s270
          %s273 = sshll.u32 %s263, 4
          %s274 = int_to_ptr.vmem [resolvable:$true] %s273
          %276 = dma.vmem_to_hbm [thread:$0]  %s274, 128, %s271, %s260
        $region32: #{tpu_custom_call.1} parent=23 // pred_fallthru
          _
      $region24: #{tpu_custom_call.1} parent=5 // pred_fallthru
        _
      %p277 = scmp.le.s32.totalorder 2, %s16
      // Predicated region
      $region33: #{tpu_custom_call.1} parent=5 // pred_check
        %p278 = pneg %p277
      $region34: #{tpu_custom_call.1} parent=5 // pred_check_branch
        %280 = sbr.rel (%p278) target = $region36
      $region35: #{tpu_custom_call.1} parent=5 // pred_region
        %s281 = ssub.s32 %s16, 2
        // Predicated region
        $region37: #{tpu_custom_call.1} parent=35 // pred_check
          %p282 = pneg %p66
        $region38: #{tpu_custom_call.1} parent=35 // pred_check_branch
          %284 = sbr.rel (%p282) target = $region40
        $region39: #{tpu_custom_call.1} parent=35 // pred_region
          %s285 = sand.u32 %s51, 1
          %s286 = scalar_lea.sflag [#allocation6], %s285
          %s287 = sand.u32 %s51, 1
          %s288 = smul.addr %s287, 8
          %s289 = scalar_lea.vmem [#allocation7], %s288
          %290 = dma.done %s286, 128
        $region40: #{tpu_custom_call.1} parent=35 // pred_fallthru
          _
      $region36: #{tpu_custom_call.1} parent=5 // pred_fallthru
        _
    $region6: #{tpu_custom_call.1} parent=1 // loop_footer
      %s20 = sadd.s32 1, %s16
    $region7: #{tpu_custom_call.1} parent=1 // loop_footer_branch
      %15 = sbr.rel target = $region3
    $region8: #{tpu_custom_call.1} parent=1 // loop_exit
      _
    %291 = vsyncpa [#allocation5], 1
    %s292 = scalar_lea.sflag [#allocation5], 1
    %293 = vsyncpa %s292, 1
    %294 = vsyncpa [#allocation6], 1
    %s295 = scalar_lea.sflag [#allocation6], 1
    %296 = vsyncpa %s295, 1

</llo_original>
